<compile_context>
chip_gen: v6e
topology: v6e:2x2x1
jax: 0.10.0
libtpu: 0.0.40
codegen_flags: <defaults>
</compile_context>

<pallas_src>
import jax
import jax.numpy as jnp
from jax.experimental import pallas as pl
from jax.experimental.pallas import tpu as pltpu

NUM_LAYERS = 50      # logical output width (PyTorch)
HIDDEN = 64          # logical hidden width (PyTorch)
H_PAD = 128          # padded hidden width (full vreg lane dim)
OUT_PAD = 128        # padded output width (lane-dense stores)
TB_MAX = 256         # batch tile cap (fits MXU M on v6e/v7x; tiny VMEM footprint)


def _round_up(n, m):
    return (n + m - 1) // m * m


def policy_net_kernel(x_ref, w1_ref, b1_ref, w2_ref, b2_ref, o_ref):
    # x_ref:  (TB, 1)         f32
    # w1_ref: (1, H_PAD)      f32  (zero-padded beyond HIDDEN)
    # b1_ref: (1, H_PAD)      f32  (zero-padded beyond HIDDEN)
    # w2_ref: (H_PAD, OUT_PAD) f32 (zero-padded rows/cols)
    # b2_ref: (1, OUT_PAD)    f32  (zero-padded beyond NUM_LAYERS)
    # o_ref:  (TB, OUT_PAD)   f32
    x = x_ref[...]                                        # (TB, 1)
    # First Linear: in_features == 1, so x @ W1 is a broadcasted multiply (VPU).
    h = jnp.maximum(x * w1_ref[...] + b1_ref[...], 0.0)   # (TB, H_PAD), ReLU fused
    # Second Linear: real matmul on the MXU (K = 128 -> one full MXU pass on v5e).
    out = jnp.dot(h, w2_ref[...], preferred_element_type=jnp.float32)  # (TB, OUT_PAD)
    o_ref[...] = out + b2_ref[...]


def policy_net_forward(x, w1, b1, w2, b2):
    """x: (B, 1) f32; w1: (1, HIDDEN); b1: (HIDDEN,) or (1, HIDDEN);
    w2: (HIDDEN, NUM_LAYERS); b2: (NUM_LAYERS,) or (1, NUM_LAYERS).
    Returns (B, NUM_LAYERS) f32, identical to PyTorch PolicyNet.forward.
    """
    B = x.shape[0]
    b1 = b1.reshape(1, HIDDEN)
    b2 = b2.reshape(1, NUM_LAYERS)

    # --- pad to lane-dense layouts (zeros are mathematically inert here) ---
    w1p = jnp.zeros((1, H_PAD), jnp.float32).at[:, :HIDDEN].set(w1)
    b1p = jnp.zeros((1, H_PAD), jnp.float32).at[:, :HIDDEN].set(b1)
    w2p = jnp.zeros((H_PAD, OUT_PAD), jnp.float32).at[:HIDDEN, :NUM_LAYERS].set(w2)
    b2p = jnp.zeros((1, OUT_PAD), jnp.float32).at[:, :NUM_LAYERS].set(b2)

    # --- batch tiling: TB multiple of 8, capped; pad B up to a multiple of TB ---
    TB = min(TB_MAX, _round_up(B, 8))
    B_pad = _round_up(B, TB)
    if B_pad != B:
        x_in = jnp.zeros((B_pad, 1), jnp.float32).at[:B, :].set(x)
    else:
        x_in = x
    n_tiles = B_pad // TB

    bytes_accessed = 4 * (B_pad * 1 + 1 * H_PAD * 2 + H_PAD * OUT_PAD
                          + 1 * OUT_PAD + B_pad * OUT_PAD)
    cost = pl.CostEstimate(
        flops=2 * B_pad * H_PAD * OUT_PAD + 3 * B_pad * H_PAD,
        transcendentals=0,
        bytes_accessed=bytes_accessed,
    )

    out_padded = pl.pallas_call(
        policy_net_kernel,
        out_shape=jax.ShapeDtypeStruct((B_pad, OUT_PAD), jnp.float32),
        grid=(n_tiles,),
        in_specs=[
            pl.BlockSpec((TB, 1), lambda i: (i, 0)),
            pl.BlockSpec((1, H_PAD), lambda i: (0, 0)),
            pl.BlockSpec((1, H_PAD), lambda i: (0, 0)),
            pl.BlockSpec((H_PAD, OUT_PAD), lambda i: (0, 0)),
            pl.BlockSpec((1, OUT_PAD), lambda i: (0, 0)),
        ],
        out_specs=pl.BlockSpec((TB, OUT_PAD), lambda i: (i, 0)),
        compiler_params=pltpu.CompilerParams(
            dimension_semantics=("parallel",),  # shards batch tiles across v7x's 2 TCs
        ),
        cost_estimate=cost,
    )(x_in, w1p, b1p, w2p, b2p)

    return out_padded[:B, :NUM_LAYERS]


def init_params(key):
    # Deterministic init mimicking PyTorch nn.Linear default:
    # U(-1/sqrt(fan_in), 1/sqrt(fan_in)) for both weight and bias.
    k1, k2, k3, k4 = jax.random.split(key, 4)
    bound1 = 1.0 / jnp.sqrt(1.0)
    w1 = jax.random.uniform(k1, (1, HIDDEN), jnp.float32, -bound1, bound1)
    b1 = jax.random.uniform(k2, (1, HIDDEN), jnp.float32, -bound1, bound1)
    bound2 = 1.0 / jnp.sqrt(float(HIDDEN))
    w2 = jax.random.uniform(k3, (HIDDEN, NUM_LAYERS), jnp.float32, -bound2, bound2)
    b2 = jax.random.uniform(k4, (1, NUM_LAYERS), jnp.float32, -bound2, bound2)
    return w1, b1, w2, b2


def reference_forward(x, w1, b1, w2, b2):
    h = jnp.maximum(x @ w1 + b1, 0.0)
    return h @ w2 + b2


if __name__ == "__main__":
    key = jax.random.PRNGKey(0)
    kx, kp, kx2 = jax.random.split(key, 3)
    w1, b1, w2, b2 = init_params(kp)

    # Small batch (single grid step, TB padded to 8-row tile).
    B = 8
    x = jax.random.normal(kx, (B, 1), jnp.float32)
    out = jax.block_until_ready(policy_net_forward(x, w1, b1, w2, b2))
    ref = reference_forward(x, w1, b1, w2, b2)
    assert out.shape == (B, NUM_LAYERS)
    assert jnp.allclose(out, ref, atol=1e-5, rtol=1e-5)

    # Larger ragged batch: exercises the multi-tile grid + batch padding path.
    B2 = 300
    x2 = jax.random.normal(kx2, (B2, 1), jnp.float32)
    out2 = jax.block_until_ready(policy_net_forward(x2, w1, b1, w2, b2))
    ref2 = reference_forward(x2, w1, b1, w2, b2)
    assert out2.shape == (B2, NUM_LAYERS)
    assert jnp.allclose(out2, ref2, atol=1e-5, rtol=1e-5)

    print("KERNEL_OK")
</pallas_src>

<mosaic_0001>
module attributes {stable_mosaic.version = 11 : i64} {
  func.func @policy_net_kernel(%arg0: i32, %arg1: memref<8x1xf32, #tpu.memory_space<vmem>>, %arg2: memref<1x128xf32, #tpu.memory_space<vmem>>, %arg3: memref<1x128xf32, #tpu.memory_space<vmem>>, %arg4: memref<128x128xf32, #tpu.memory_space<vmem>>, %arg5: memref<1x128xf32, #tpu.memory_space<vmem>>, %arg6: memref<8x128xf32, #tpu.memory_space<vmem>>) attributes {dimension_semantics = [#tpu.dimension_semantics<parallel>], iteration_bounds = array<i64: 1>, scalar_prefetch = 0 : i64, scratch_operands = 0 : i64, tpu.core_type = #tpu.core_type<tc>, window_params = [{transform_indices = @transform_0, window_bounds = array<i64: 8, 1>}, {pipeline_mode = #tpu.pipeline_mode<synchronous>, transform_indices = @transform_1, window_bounds = array<i64: 1, 128>}, {pipeline_mode = #tpu.pipeline_mode<synchronous>, transform_indices = @transform_2, window_bounds = array<i64: 1, 128>}, {pipeline_mode = #tpu.pipeline_mode<synchronous>, transform_indices = @transform_3, window_bounds = array<i64: 128, 128>}, {pipeline_mode = #tpu.pipeline_mode<synchronous>, transform_indices = @transform_4, window_bounds = array<i64: 1, 128>}, {transform_indices = @transform_5, window_bounds = array<i64: 8, 128>}]} {
    %c0 = arith.constant 0 : index
    %c0_0 = arith.constant 0 : index
    %0 = vector.load %arg1[%c0, %c0_0] : memref<8x1xf32, #tpu.memory_space<vmem>>, vector<8x1xf32>
    %c0_1 = arith.constant 0 : index
    %c0_2 = arith.constant 0 : index
    %1 = vector.load %arg2[%c0_1, %c0_2] : memref<1x128xf32, #tpu.memory_space<vmem>>, vector<1x128xf32>
    %2 = vector.broadcast %0 : vector<8x1xf32> to vector<8x128xf32>
    %3 = vector.broadcast %1 : vector<1x128xf32> to vector<8x128xf32>
    %4 = arith.mulf %2, %3 : vector<8x128xf32>
    %c0_3 = arith.constant 0 : index
    %c0_4 = arith.constant 0 : index
    %5 = vector.load %arg3[%c0_3, %c0_4] : memref<1x128xf32, #tpu.memory_space<vmem>>, vector<1x128xf32>
    %6 = vector.broadcast %5 : vector<1x128xf32> to vector<8x128xf32>
    %7 = arith.addf %4, %6 : vector<8x128xf32>
    %cst = arith.constant 0.000000e+00 : f32
    %8 = vector.broadcast %cst : f32 to vector<8x128xf32>
    %9 = arith.maximumf %7, %8 : vector<8x128xf32>
    %c0_5 = arith.constant 0 : index
    %c0_6 = arith.constant 0 : index
    %10 = vector.load %arg4[%c0_5, %c0_6] : memref<128x128xf32, #tpu.memory_space<vmem>>, vector<128x128xf32>
    %cst_7 = arith.constant dense<0.000000e+00> : vector<8x128xf32>
    %11 = tpu.matmul %9, %10, %cst_7 {dimension_numbers = #tpu.dot_dimension_numbers<[1], [0], [0], [1], [0, 0, 1, 1], [], []>} : vector<8x128xf32>, vector<128x128xf32>, vector<8x128xf32> -> vector<8x128xf32>
    %c0_8 = arith.constant 0 : index
    %c0_9 = arith.constant 0 : index
    %12 = vector.load %arg5[%c0_8, %c0_9] : memref<1x128xf32, #tpu.memory_space<vmem>>, vector<1x128xf32>
    %13 = vector.broadcast %12 : vector<1x128xf32> to vector<8x128xf32>
    %14 = arith.addf %11, %13 : vector<8x128xf32>
    %c0_10 = arith.constant 0 : index
    %c0_11 = arith.constant 0 : index
    %15 = vector.load %arg6[%c0_10, %c0_11] : memref<8x128xf32, #tpu.memory_space<vmem>>, vector<8x128xf32>
    tpu.vector_store %arg6[%c0_10, %c0_11], %14 {strides = array<i32>} : memref<8x128xf32, #tpu.memory_space<vmem>>, vector<8x128xf32>,
    return
  }
  func.func @transform_0(%arg0: i32) -> (i32, i32) {
    %c0_i32 = arith.constant 0 : i32
    %c0_i32_0 = arith.constant 0 : i32
    return %arg0, %c0_i32 : i32, i32
  }
  func.func @transform_1(%arg0: i32) -> (i32, i32) {
    %c0_i32 = arith.constant 0 : i32
    %c0_i32_0 = arith.constant 0 : i32
    %c0_i32_1 = arith.constant 0 : i32
    return %c0_i32, %c0_i32_0 : i32, i32
  }
  func.func @transform_2(%arg0: i32) -> (i32, i32) {
    %c0_i32 = arith.constant 0 : i32
    %c0_i32_0 = arith.constant 0 : i32
    %c0_i32_1 = arith.constant 0 : i32
    return %c0_i32, %c0_i32_0 : i32, i32
  }
  func.func @transform_3(%arg0: i32) -> (i32, i32) {
    %c0_i32 = arith.constant 0 : i32
    %c0_i32_0 = arith.constant 0 : i32
    %c0_i32_1 = arith.constant 0 : i32
    return %c0_i32, %c0_i32_0 : i32, i32
  }
  func.func @transform_4(%arg0: i32) -> (i32, i32) {
    %c0_i32 = arith.constant 0 : i32
    %c0_i32_0 = arith.constant 0 : i32
    %c0_i32_1 = arith.constant 0 : i32
    return %c0_i32, %c0_i32_0 : i32, i32
  }
  func.func @transform_5(%arg0: i32) -> (i32, i32) {
    %c0_i32 = arith.constant 0 : i32
    %c0_i32_0 = arith.constant 0 : i32
    return %arg0, %c0_i32 : i32, i32
  }
}

</mosaic_0001>

<llo_original>
// kernel: tpu_custom_call.1
$region0: #{tpu_custom_call.1}
  #allocation0 [shape = 'u32[]', space=smem, size = 0x4, offset = 0x4, fixed_abs, tag = 'smem constant byte address 0x4 - core index']
  #allocation1 [shape = 'u32[144,128]{1,0:T(1,128)}', space=vmem, size = 0x12000, scoped, tag = 'internal scratch']
  %s0 = inlined_call_operand.vmem [shape: f32[8,1], index: 0, kind: input, shape index: {}]
  %s1 = inlined_call_operand.vmem [shape: f32[1,128], index: 1, kind: input, shape index: {}]
  %s2 = inlined_call_operand.vmem [shape: f32[1,128], index: 2, kind: input, shape index: {}]
  %s3 = inlined_call_operand.hbm [shape: f32[128,128], index: 3, kind: input, shape index: {}]
  %s4 = inlined_call_operand.vmem [shape: f32[1,128], index: 4, kind: input, shape index: {}]
  %s5 = inlined_call_operand.hbm [shape: f32[8,128], index: 5, kind: output, shape index: {}]
  %s6 = sld [smem:[#allocation0]]
  $region34: #{tpu_custom_call.1} parent=0
    _
  %s8 = ssub.s32 1, %s6
  %s9 = scalar_select 0, %s8, %s6
  $region1: #{tpu_custom_call.1} parent=0
    #allocation2 [shape = 'u8[65536]{0}', space=vmem, size = 0x10000, scoped, tag = 'input window, operand 3, single buffered']
    #allocation3 [shape = 's32[1]{0}', space=sflag, size = 0x4, scoped, tag = 'scoped memory for tpu_custom_call.1']
    #allocation4 [shape = 's32[1]{0}', space=sflag, size = 0x4, scoped, tag = 'scoped memory for tpu_custom_call.1']
    #allocation5 [shape = 'u8[4096]{0}', space=vmem, size = 0x1000, scoped, tag = 'output window, operand 0, single buffered']
    %10 = vsyncpa [#allocation3], 0
    %11 = vsyncpa [#allocation4], 0
    // Predicated region
    $region2: #{tpu_custom_call.1} parent=1 // pred_check
      _
    $region3: #{tpu_custom_call.1} parent=1 // pred_check_branch
      %13 = sbr.rel (0) target = $region5
    $region4: #{tpu_custom_call.1} parent=1 // pred_region
      _
    $region5: #{tpu_custom_call.1} parent=1 // pred_fallthru
      _
    // Predicated region
    $region6: #{tpu_custom_call.1} parent=1 // pred_check
      _
    $region7: #{tpu_custom_call.1} parent=1 // pred_check_branch
      %15 = sbr.rel (0) target = $region9
    $region8: #{tpu_custom_call.1} parent=1 // pred_region
      _
    $region9: #{tpu_custom_call.1} parent=1 // pred_fallthru
      _
    // Predicated region
    $region10: #{tpu_custom_call.1} parent=1 // pred_check
      _
    $region11: #{tpu_custom_call.1} parent=1 // pred_check_branch
      %17 = sbr.rel (0) target = $region13
    $region12: #{tpu_custom_call.1} parent=1 // pred_region
      _
    $region13: #{tpu_custom_call.1} parent=1 // pred_fallthru
      _
    // Predicated region
    $region14: #{tpu_custom_call.1} parent=1 // pred_check
      _
    $region15: #{tpu_custom_call.1} parent=1 // pred_check_branch
      %19 = sbr.rel (0) target = $region17
    $region16: #{tpu_custom_call.1} parent=1 // pred_region
      %s21 = ssub.s32 2048, 2048
      %22 = vsyncadd [#allocation3], %s21
      %s23 = sshll.u32 [#allocation2], 4
      %s24 = int_to_ptr.vmem [resolvable:$true] %s23
      %29 = dma.hbm_to_vmem [thread:$0]  %s3, 2048, %s24, [#allocation3], 128, 128, 8
    $region17: #{tpu_custom_call.1} parent=1 // pred_fallthru
      _
    // Predicated region
    $region18: #{tpu_custom_call.1} parent=1 // pred_check
      _
    $region19: #{tpu_custom_call.1} parent=1 // pred_check_branch
      %31 = sbr.rel (0) target = $region21
    $region20: #{tpu_custom_call.1} parent=1 // pred_region
      _
    $region21: #{tpu_custom_call.1} parent=1 // pred_fallthru
      _
    // Predicated region
    $region22: #{tpu_custom_call.1} parent=1 // pred_check
      _
    $region23: #{tpu_custom_call.1} parent=1 // pred_check_branch
      %33 = sbr.rel (0) target = $region25
    $region24: #{tpu_custom_call.1} parent=1 // pred_region
      %34 = dma.done [#allocation3], 2048
    $region25: #{tpu_custom_call.1} parent=1 // pred_fallthru
      _
    %v35 = vld [vmem:[%s0] sm:$0xff]
    %v36 = vld [vmem:[%s1] sm:$0x1]
    %38 = vset.pattern.permute.xlu0 0
    %39 = vperm.xlu0 %38, %v35
    %v40 = vpop.permute.xlu0 %39
    %v43 = vlaneseq
    %v44 = vshrl.u32 %v43, 7
    %v45 = vsub.s32 0, %v44
    %v46 = vrot.slane %v36, %v45
    %v48 = vmul.f32 %v40, %v46
    %v49 = vld [vmem:[%s2] sm:$0x1]
    %v51 = vlaneseq
    %v52 = vshrl.u32 %v51, 7
    %v53 = vsub.s32 0, %v52
    %v54 = vrot.slane %v49, %v53
    %v56 = vadd.f32 %v48, %v54
    %v57 = vmax.f32 %v56, 0.0
    %v58 = vld [vmem:[#allocation2] sm:$0xff]
    %v59 = vld [vmem:[#allocation2 + $0x8] sm:$0xff]
    %v60 = vld [vmem:[#allocation2 + $0x10] sm:$0xff]
    %v61 = vld [vmem:[#allocation2 + $0x18] sm:$0xff]
    %v62 = vld [vmem:[#allocation2 + $0x20] sm:$0xff]
    %v63 = vld [vmem:[#allocation2 + $0x28] sm:$0xff]
    %v64 = vld [vmem:[#allocation2 + $0x30] sm:$0xff]
    %v65 = vld [vmem:[#allocation2 + $0x38] sm:$0xff]
    %v66 = vld [vmem:[#allocation2 + $0x40] sm:$0xff]
    %v67 = vld [vmem:[#allocation2 + $0x48] sm:$0xff]
    %v68 = vld [vmem:[#allocation2 + $0x50] sm:$0xff]
    %v69 = vld [vmem:[#allocation2 + $0x58] sm:$0xff]
    %v70 = vld [vmem:[#allocation2 + $0x60] sm:$0xff]
    %v71 = vld [vmem:[#allocation2 + $0x68] sm:$0xff]
    %v72 = vld [vmem:[#allocation2 + $0x70] sm:$0xff]
    %v73 = vld [vmem:[#allocation2 + $0x78] sm:$0xff]
    %v74 = vld [vmem:[%s4] sm:$0x1]
    %v76 = vlaneseq
    %v77 = vshrl.u32 %v76, 7
    %v78 = vsub.s32 0, %v77
    %v79 = vrot.slane %v74, %v78
    %81 = vmatprep.subr.mxu0 0.0
    %82 = vmatpush1.msra.mxu0 %v73
    %83 = vmatprep.subr.mxu0 0.0
    %84 = vmatpush1.msra.mxu0 %v72
    %85 = vmatprep.subr.mxu0 0.0
    %86 = vmatpush1.msra.mxu0 %v71
    %87 = vmatprep.subr.mxu0 0.0
    %88 = vmatpush1.msra.mxu0 %v70
    %89 = vmatprep.subr.mxu0 0.0
    %90 = vmatpush1.msra.mxu0 %v69
    %91 = vmatprep.subr.mxu0 0.0
    %92 = vmatpush1.msra.mxu0 %v68
    %93 = vmatprep.subr.mxu0 0.0
    %94 = vmatpush1.msra.mxu0 %v67
    %95 = vmatprep.subr.mxu0 0.0
    %96 = vmatpush1.msra.mxu0 %v66
    %97 = vmatprep.subr.mxu0 0.0
    %98 = vmatpush1.msra.mxu0 %v65
    %99 = vmatprep.subr.mxu0 0.0
    %100 = vmatpush1.msra.mxu0 %v64
    %101 = vmatprep.subr.mxu0 0.0
    %102 = vmatpush1.msra.mxu0 %v63
    %103 = vmatprep.subr.mxu0 0.0
    %104 = vmatpush1.msra.mxu0 %v62
    %105 = vmatprep.subr.mxu0 0.0
    %106 = vmatpush1.msra.mxu0 %v61
    %107 = vmatprep.subr.mxu0 0.0
    %108 = vmatpush1.msra.mxu0 %v60
    %109 = vmatprep.subr.mxu0 0.0
    %110 = vmatpush1.msra.mxu0 %v59
    %111 = vmatprep.subr.mxu0 0.0
    %112 = vmatpush1.msra.mxu0 %v58
    %113 = vmatprep.subr.mxu0 0.0
    %114 = vmatpush2.msra.mxu0 0.0
    %115 = vmatprep.subr.mxu0 0.0
    %116 = vmatpush2.msra.mxu0 0.0
    %117 = vmatprep.subr.mxu0 0.0
    %118 = vmatpush2.msra.mxu0 0.0
    %119 = vmatprep.subr.mxu0 0.0
    %120 = vmatpush2.msra.mxu0 0.0
    %121 = vmatprep.subr.mxu0 0.0
    %122 = vmatpush2.msra.mxu0 0.0
    %123 = vmatprep.subr.mxu0 0.0
    %124 = vmatpush2.msra.mxu0 0.0
    %125 = vmatprep.subr.mxu0 0.0
    %126 = vmatpush2.msra.mxu0 0.0
    %127 = vmatprep.subr.mxu0 0.0
    %128 = vmatpush2.msra.mxu0 0.0
    %129 = vmatprep.subr.mxu0 0.0
    %130 = vmatpush2.msra.mxu0 0.0
    %131 = vmatprep.subr.mxu0 0.0
    %132 = vmatpush2.msra.mxu0 0.0
    %133 = vmatprep.subr.mxu0 0.0
    %134 = vmatpush2.msra.mxu0 0.0
    %135 = vmatprep.subr.mxu0 0.0
    %136 = vmatpush2.msra.mxu0 0.0
    %137 = vmatprep.subr.mxu0 0.0
    %138 = vmatpush2.msra.mxu0 0.0
    %139 = vmatprep.subr.mxu0 0.0
    %140 = vmatpush2.msra.mxu0 0.0
    %141 = vmatprep.subr.mxu0 0.0
    %142 = vmatpush2.msra.mxu0 0.0
    %143 = vmatprep.subr.mxu0 0.0
    %144 = vmatpush2.msra.mxu0 0.0
    %145 = vmatprep.mubr.f32.mxu0 0.0
    %146 = vmatmul.mubr.f32.gmra.mxu0 %v57
    %v147 = vpop.f32.mrf.mxu0
    %v148 = vadd.f32 %v79, %v147
    %v149 = vpop.f32.mrf.mxu0
    %150 = vdwg.mxu0
    %151 = vst [vmem:[#allocation5] sm:$0xff] %v148
    // Predicated region
    $region26: #{tpu_custom_call.1} parent=1 // pred_check
      _
    $region27: #{tpu_custom_call.1} parent=1 // pred_check_branch
      %153 = sbr.rel (0) target = $region29
    $region28: #{tpu_custom_call.1} parent=1 // pred_region
      %s155 = ssub.s32 128, 128
      %156 = vsyncadd [#allocation4], %s155
      %s158 = sshll.u32 [#allocation5], 4
      %s159 = int_to_ptr.vmem [resolvable:$true] %s158
      %161 = dma.vmem_to_hbm [thread:$0]  %s159, 128, %s5, [#allocation4]
    $region29: #{tpu_custom_call.1} parent=1 // pred_fallthru
      _
    // Predicated region
    $region30: #{tpu_custom_call.1} parent=1 // pred_check
      _
    $region31: #{tpu_custom_call.1} parent=1 // pred_check_branch
      %163 = sbr.rel (0) target = $region33
    $region32: #{tpu_custom_call.1} parent=1 // pred_region
      %164 = dma.done [#allocation4], 128
    $region33: #{tpu_custom_call.1} parent=1 // pred_fallthru
      _
    %165 = vsyncpa [#allocation3], 1
    %166 = vsyncpa [#allocation4], 1

</llo_original>
